<compile_context>
chip_gen: v7x
topology: tpu7x:2x2x1
jax: 0.10.0
libtpu: 0.0.40
codegen_flags: <defaults>
</compile_context>

<pallas_src>
import functools
import math

import jax
import jax.numpy as jnp
from jax.experimental import pallas as pl
from jax.experimental.pallas import tpu as pltpu


def _smooth_ce_kernel(feat_ref, tgt_ref, out_ref, acc_ref, *, u, w, n_total):
    # feat_ref: [TB, C] (any float dtype), tgt_ref: [TB, 1] int32,
    # out_ref: [1, 1, 1] f32 (per-parallel-slice partial sum), acc_ref: [TB, 1] f32 scratch.
    j = pl.program_id(1)

    @pl.when(j == 0)
    def _():
        acc_ref[...] = jnp.zeros_like(acc_ref)

    f = feat_ref[...].astype(jnp.float32)                      # [TB, C]
    tb, c = f.shape
    tgt = tgt_ref[...]                                         # [TB, 1] int32

    # Per-row reductions (lane axis); no [TB,C] temporaries are kept around.
    cls = jax.lax.broadcasted_iota(jnp.int32, (tb, c), 1)
    is_tgt = cls == tgt
    m = jnp.max(f, axis=1, keepdims=True)                      # [TB, 1]
    lse = jnp.log(jnp.sum(jnp.exp(f - m), axis=1, keepdims=True))
    logz = m + lse                                             # log of softmax denominator
    row_sum = jnp.sum(f, axis=1, keepdims=True)
    tgt_logit = jnp.sum(jnp.where(is_tgt, f, 0.0), axis=1, keepdims=True)

    # sum_c smooth * log_prb  for each row (smooth = u + one_hot*w).
    cross = u * (row_sum - c * logz) + w * (tgt_logit - logz)  # [TB, 1]

    # Mask rows past the true batch size (ragged last tile / duplicated clamped tiles).
    tile_idx = pl.program_id(0) * pl.num_programs(1) + j
    rows = tile_idx * tb + jax.lax.broadcasted_iota(jnp.int32, (tb, 1), 0)
    cross = jnp.where(rows < n_total, cross, 0.0)

    acc_ref[...] += cross

    @pl.when(j == pl.num_programs(1) - 1)
    def _():
        out_ref[...] = jnp.sum(acc_ref[...]).reshape(1, 1, 1)


def _choose_tile_batch(n, c, itemsize):
    """Largest batch tile that keeps the double-buffered feature input ~<=24 MiB (v7x-safe)."""
    sub = 8 if itemsize >= 4 else (16 if itemsize == 2 else 32)
    budget = 24 * 1024 * 1024
    tb = budget // (2 * c * itemsize)
    tb = max(sub, min(int(tb), 1024))
    tb = (tb // sub) * sub
    n_pad = ((n + sub - 1) // sub) * sub
    return min(tb, max(sub, n_pad))


def smooth_label_cross_entropy_loss(feature, target, *, eps=0.1, tile_batch=None):
    """feature: [N, C] float (f32 or bf16), target: [N] int class ids. Returns scalar f32 loss.

    tile_batch, if given, should be a multiple of 8 (16 for bf16 inputs).
    """
    n, c = feature.shape
    itemsize = jnp.dtype(feature.dtype).itemsize
    tb = int(tile_batch) if tile_batch is not None else _choose_tile_batch(n, c, itemsize)

    n_tiles = pl.cdiv(n, tb)
    p_dim = 2 if n_tiles >= 2 else 1          # leading "parallel" axis -> both TCs on v7x
    n_inner = pl.cdiv(n_tiles, p_dim)

    tgt2d = target.astype(jnp.int32).reshape(n, 1)

    # Smoothing coefficients and the analytically hoisted entropy term
    # sum_c smooth*log(smooth) = (1-eps)*log(1-eps) + eps*log(eps/(C-1))  (xlogy convention).
    u = eps / (c - 1)
    w = (1.0 - eps) - u
    ent = 0.0
    if (1.0 - eps) > 0.0:
        ent += (1.0 - eps) * math.log(1.0 - eps)
    if eps > 0.0:
        ent += eps * math.log(eps / (c - 1))

    kernel = functools.partial(_smooth_ce_kernel, u=float(u), w=float(w), n_total=n)

    def block_idx(pi, ji):
        # Clamp so padded (p, j) combinations never DMA out of range; their rows are masked.
        return (jnp.minimum(pi * n_inner + ji, n_tiles - 1), 0)

    partials = pl.pallas_call(
        kernel,
        out_shape=jax.ShapeDtypeStruct((p_dim, 1, 1), jnp.float32),
        grid_spec=pltpu.PrefetchScalarGridSpec(
            num_scalar_prefetch=0,
            grid=(p_dim, n_inner),
            in_specs=[
                pl.BlockSpec((tb, c), block_idx),
                pl.BlockSpec((tb, 1), block_idx),
            ],
            out_specs=pl.BlockSpec((1, 1, 1), lambda pi, ji: (pi, 0, 0)),
            scratch_shapes=[pltpu.VMEM((tb, 1), jnp.float32)],
        ),
        compiler_params=pltpu.CompilerParams(
            dimension_semantics=("parallel", "arbitrary"),
            vmem_limit_bytes=32 * 1024 * 1024,
        ),
    )(feature, tgt2d)

    return jnp.float32(ent) - jnp.sum(partials) / jnp.float32(n)


def _reference(feature, target, eps=0.1):
    n, c = feature.shape
    one_hot = jax.nn.one_hot(target, c, dtype=jnp.float32)
    smooth = one_hot * (1.0 - eps) + (1.0 - one_hot) * (eps / (c - 1))
    log_prb = jax.nn.log_softmax(feature.astype(jnp.float32), axis=1)
    return jnp.sum(smooth * (jnp.log(smooth) - log_prb)) / n


if __name__ == "__main__":
    key = jax.random.PRNGKey(0)
    k1, k2 = jax.random.split(key)

    # Small demo shapes (single-tile path, f32 logits).
    N, C = 16, 32
    feature = jax.random.normal(k1, (N, C), dtype=jnp.float32)
    target = jax.random.randint(k2, (N,), 0, C, dtype=jnp.int32)
    loss = jax.block_until_ready(smooth_label_cross_entropy_loss(feature, target, eps=0.1))
    ref = _reference(feature, target, eps=0.1)
    assert jnp.allclose(loss, ref, rtol=1e-5, atol=1e-5), (loss, ref)

    # Multi-tile path: ragged batch (N=12, tile=8) -> 2 tiles, parallel axis of 2, row masking.
    N2, C2 = 12, 32
    f2 = jax.random.normal(k1, (N2, C2), dtype=jnp.float32)
    t2 = jax.random.randint(k2, (N2,), 0, C2, dtype=jnp.int32)
    loss2 = jax.block_until_ready(
        smooth_label_cross_entropy_loss(f2, t2, eps=0.1, tile_batch=8))
    ref2 = _reference(f2, t2, eps=0.1)
    assert jnp.allclose(loss2, ref2, rtol=1e-5, atol=1e-5), (loss2, ref2)

    # bf16 logits fed straight through (upcast happens in-kernel), default tile.
    f3 = jax.random.normal(k1, (N, C), dtype=jnp.bfloat16)
    loss3 = jax.block_until_ready(smooth_label_cross_entropy_loss(f3, target, eps=0.1))
    ref3 = _reference(f3.astype(jnp.float32), target, eps=0.1)
    assert jnp.allclose(loss3, ref3, rtol=1e-3, atol=1e-3), (loss3, ref3)

    print("KERNEL_OK")
</pallas_src>

<mosaic_0001>
module attributes {stable_mosaic.version = 11 : i64} {
  func.func @_smooth_ce_kernel(%arg0: i32, %arg1: i32, %arg2: memref<16x32xf32, #tpu.memory_space<vmem>>, %arg3: memref<16x1xi32, #tpu.memory_space<vmem>>, %arg4: memref<1x1x1xf32, #tpu.memory_space<vmem>>, %arg5: memref<16x1xf32, #tpu.memory_space<vmem>>) attributes {dimension_semantics = [#tpu.dimension_semantics<parallel>, #tpu.dimension_semantics<arbitrary>], iteration_bounds = array<i64: 1, 1>, scalar_prefetch = 0 : i64, scratch_operands = 1 : i64, tpu.core_type = #tpu.core_type<tc>, window_params = [{transform_indices = @transform_0, window_bounds = array<i64: 16, 32>}, {transform_indices = @transform_1, window_bounds = array<i64: 16, 1>}, {transform_indices = @transform_2, window_bounds = array<i64: 1, 1, 1>}]} {
    %c0_i32 = arith.constant 0 : i32
    %0 = arith.cmpi eq, %arg1, %c0_i32 : i32
    %1 = arith.extui %0 : i1 to i32
    %c0_i32_0 = arith.constant 0 : i32
    %2 = arith.cmpi ne, %1, %c0_i32_0 : i32
    scf.if %2 {
      %cst_19 = arith.constant 0.000000e+00 : f32
      %48 = vector.broadcast %cst_19 : f32 to vector<16x1xf32>
      %c0_20 = arith.constant 0 : index
      %c0_21 = arith.constant 0 : index
      %49 = vector.load %arg5[%c0_20, %c0_21] : memref<16x1xf32, #tpu.memory_space<vmem>>, vector<16x1xf32>
      tpu.vector_store %arg5[%c0_20, %c0_21], %48 {strides = array<i32>} : memref<16x1xf32, #tpu.memory_space<vmem>>, vector<16x1xf32>,
    } else {
    }
    %c0 = arith.constant 0 : index
    %c0_1 = arith.constant 0 : index
    %3 = vector.load %arg2[%c0, %c0_1] : memref<16x32xf32, #tpu.memory_space<vmem>>, vector<16x32xf32>
    %c0_2 = arith.constant 0 : index
    %c0_3 = arith.constant 0 : index
    %4 = vector.load %arg3[%c0_2, %c0_3] : memref<16x1xi32, #tpu.memory_space<vmem>>, vector<16x1xi32>
    %5 = tpu.iota {dimensions = array<i32: 1>} : vector<16x32xi32>
    %6 = vector.broadcast %4 : vector<16x1xi32> to vector<16x32xi32>
    %7 = arith.cmpi eq, %5, %6 : vector<16x32xi32>
    %cst = arith.constant dense<0xFF800000> : vector<16xf32>
    %8 = vector.multi_reduction <maximumf>, %3, %cst [1] : vector<16x32xf32> to vector<16xf32>
    %9 = vector.shape_cast %8 : vector<16xf32> to vector<16x1xf32>
    %10 = vector.broadcast %9 : vector<16x1xf32> to vector<16x32xf32>
    %11 = arith.subf %3, %10 : vector<16x32xf32>
    %12 = math.exp %11 : vector<16x32xf32>
    %cst_4 = arith.constant dense<0.000000e+00> : vector<16xf32>
    %13 = vector.multi_reduction <add>, %12, %cst_4 [1] : vector<16x32xf32> to vector<16xf32>
    %14 = vector.shape_cast %13 : vector<16xf32> to vector<16x1xf32>
    %15 = math.log %14 : vector<16x1xf32>
    %16 = arith.addf %9, %15 : vector<16x1xf32>
    %cst_5 = arith.constant dense<0.000000e+00> : vector<16xf32>
    %17 = vector.multi_reduction <add>, %3, %cst_5 [1] : vector<16x32xf32> to vector<16xf32>
    %18 = vector.shape_cast %17 : vector<16xf32> to vector<16x1xf32>
    %cst_6 = arith.constant 0.000000e+00 : f32
    %19 = vector.broadcast %cst_6 : f32 to vector<16x32xf32>
    %20 = arith.select %7, %3, %19 : vector<16x32xi1>, vector<16x32xf32>
    %cst_7 = arith.constant dense<0.000000e+00> : vector<16xf32>
    %21 = vector.multi_reduction <add>, %20, %cst_7 [1] : vector<16x32xf32> to vector<16xf32>
    %22 = vector.shape_cast %21 : vector<16xf32> to vector<16x1xf32>
    %cst_8 = arith.constant 3.200000e+01 : f32
    %23 = vector.broadcast %cst_8 : f32 to vector<16x1xf32>
    %24 = arith.mulf %23, %16 : vector<16x1xf32>
    %25 = arith.subf %18, %24 : vector<16x1xf32>
    %cst_9 = arith.constant 0.0032258064 : f32
    %26 = vector.broadcast %cst_9 : f32 to vector<16x1xf32>
    %27 = arith.mulf %26, %25 : vector<16x1xf32>
    %28 = arith.subf %22, %16 : vector<16x1xf32>
    %cst_10 = arith.constant 0.896774172 : f32
    %29 = vector.broadcast %cst_10 : f32 to vector<16x1xf32>
    %30 = arith.mulf %29, %28 : vector<16x1xf32>
    %31 = arith.addf %27, %30 : vector<16x1xf32>
    %c1_i32 = arith.constant 1 : i32
    %32 = arith.muli %arg0, %c1_i32 : i32
    %33 = arith.addi %32, %arg1 : i32
    %c16_i32 = arith.constant 16 : i32
    %34 = arith.muli %33, %c16_i32 : i32
    %35 = tpu.iota {dimensions = array<i32: 0>} : vector<16x1xi32>
    %36 = vector.broadcast %34 : i32 to vector<16x1xi32>
    %37 = arith.addi %36, %35 : vector<16x1xi32>
    %c16_i32_11 = arith.constant 16 : i32
    %38 = vector.broadcast %c16_i32_11 : i32 to vector<16x1xi32>
    %39 = arith.cmpi slt, %37, %38 : vector<16x1xi32>
    %cst_12 = arith.constant 0.000000e+00 : f32
    %40 = vector.broadcast %cst_12 : f32 to vector<16x1xf32>
    %41 = arith.select %39, %31, %40 : vector<16x1xi1>, vector<16x1xf32>
    %c0_13 = arith.constant 0 : index
    %c0_14 = arith.constant 0 : index
    %42 = vector.load %arg5[%c0_13, %c0_14] : memref<16x1xf32, #tpu.memory_space<vmem>>, vector<16x1xf32>
    %43 = arith.addf %42, %41 : vector<16x1xf32>
    %c0_15 = arith.constant 0 : index
    %c0_16 = arith.constant 0 : index
    %44 = vector.load %arg5[%c0_15, %c0_16] : memref<16x1xf32, #tpu.memory_space<vmem>>, vector<16x1xf32>
    tpu.vector_store %arg5[%c0_15, %c0_16], %43 {strides = array<i32>} : memref<16x1xf32, #tpu.memory_space<vmem>>, vector<16x1xf32>,
    %c0_i32_17 = arith.constant 0 : i32
    %45 = arith.cmpi eq, %arg1, %c0_i32_17 : i32
    %46 = arith.extui %45 : i1 to i32
    %c0_i32_18 = arith.constant 0 : i32
    %47 = arith.cmpi ne, %46, %c0_i32_18 : i32
    scf.if %47 {
      %c0_19 = arith.constant 0 : index
      %c0_20 = arith.constant 0 : index
      %48 = vector.load %arg5[%c0_19, %c0_20] : memref<16x1xf32, #tpu.memory_space<vmem>>, vector<16x1xf32>
      %49 = vector.shape_cast %48 : vector<16x1xf32> to vector<1x16x1xf32>
      %cst_21 = arith.constant dense<0.000000e+00> : vector<1xf32>
      %50 = vector.multi_reduction <add>, %49, %cst_21 [1, 2] : vector<1x16x1xf32> to vector<1xf32>
      %51 = vector.shape_cast %50 : vector<1xf32> to vector<1x1x1xf32>
      %52 = vector.extract %51[0, 0, 0] : f32 from vector<1x1x1xf32>
      %53 = vector.broadcast %52 : f32 to vector<1x1x1xf32>
      %c0_22 = arith.constant 0 : index
      %c0_23 = arith.constant 0 : index
      %c0_24 = arith.constant 0 : index
      %54 = vector.load %arg4[%c0_22, %c0_23, %c0_24] : memref<1x1x1xf32, #tpu.memory_space<vmem>>, vector<1x1x1xf32>
      tpu.vector_store %arg4[%c0_22, %c0_23, %c0_24], %53 {strides = array<i32>} : memref<1x1x1xf32, #tpu.memory_space<vmem>>, vector<1x1x1xf32>,
    } else {
    }
    return
  }
  func.func @transform_0(%arg0: i32, %arg1: i32) -> (i32, i32) {
    %c1_i32 = arith.constant 1 : i32
    %0 = arith.muli %arg0, %c1_i32 : i32
    %1 = arith.addi %0, %arg1 : i32
    %c0_i32 = arith.constant 0 : i32
    %2 = arith.minsi %1, %c0_i32 : i32
    %c0_i32_0 = arith.constant 0 : i32
    %c0_i32_1 = arith.constant 0 : i32
    return %2, %c0_i32_0 : i32, i32
  }
  func.func @transform_1(%arg0: i32, %arg1: i32) -> (i32, i32) {
    %c1_i32 = arith.constant 1 : i32
    %0 = arith.muli %arg0, %c1_i32 : i32
    %1 = arith.addi %0, %arg1 : i32
    %c0_i32 = arith.constant 0 : i32
    %2 = arith.minsi %1, %c0_i32 : i32
    %c0_i32_0 = arith.constant 0 : i32
    %c0_i32_1 = arith.constant 0 : i32
    return %2, %c0_i32_0 : i32, i32
  }
  func.func @transform_2(%arg0: i32, %arg1: i32) -> (i32, i32, i32) {
    %c0_i32 = arith.constant 0 : i32
    %c0_i32_0 = arith.constant 0 : i32
    %c0_i32_1 = arith.constant 0 : i32
    return %arg0, %c0_i32, %c0_i32_0 : i32, i32, i32
  }
}

</mosaic_0001>

<llo_original>
// kernel: tpu_custom_call.1
$region0: #{tpu_custom_call.1}
  #allocation0 [shape = 'u32[]', space=smem, size = 0x4, offset = 0x4, fixed_abs, tag = 'smem constant byte address 0x4 - core index']
  #allocation1 [shape = 'u32[144,128]{1,0:T(1,128)}', space=vmem, size = 0x12000, scoped, tag = 'internal scratch']
  #allocation2 [shape = 'f32[16,1]{1,0:T(8,128)}', space=vmem, size = 0x2000, scoped, tag = 'scratch operand']
  %s0 = inlined_call_operand.vmem [shape: f32[16,32], index: 0, kind: input, shape index: {}]
  %s1 = inlined_call_operand.vmem [shape: s32[16,1], index: 1, kind: input, shape index: {}]
  %s2 = inlined_call_operand.hbm [shape: f32[1,1,1], index: 2, kind: output, shape index: {}]
  %s3 = sld [smem:[#allocation0]]
  $region26: #{tpu_custom_call.1} parent=0
    _
  %s5 = ssub.s32 1, %s3
  %s6 = scalar_select 0, %s5, %s3
  $region1: #{tpu_custom_call.1} parent=0
    #allocation3 [shape = 'u8[512]{0}', space=vmem, size = 0x400, scoped, tag = 'output window, operand 0, single buffered']
    #allocation4 [shape = 's32[1]{0}', space=sflag, size = 0x4, scoped, tag = 'scoped memory for tpu_custom_call.1']
    %7 = vsyncpa [#allocation4], 0
    // Predicated region
    $region2: #{tpu_custom_call.1} parent=1 // pred_check
      _
    $region3: #{tpu_custom_call.1} parent=1 // pred_check_branch
      %9 = sbr.rel (0) target = $region5
    $region4: #{tpu_custom_call.1} parent=1 // pred_region
      %s10 = sadd.s32 0, 0
      %p11 = scmp.lt.s32.totalorder %s10, 0
      %s12 = scalar_select %p11, %s10, 0
      %s13 = smul.u32 2, %s12
      %p14 = scmp.lt.s32.totalorder %s13, 1
      %s15 = scalar_select %p14, %s13, 1
      %s16 = smul.addr %s15, 8
      %s17 = scalar_lea.vmem %s0, %s16
      %s18 = sadd.s32 0, 0
      %p19 = scmp.lt.s32.totalorder %s18, 0
      %s20 = scalar_select %p19, %s18, 0
      %s21 = smul.u32 2, %s20
    $region5: #{tpu_custom_call.1} parent=1 // pred_fallthru
      _
    // Predicated region
    $region6: #{tpu_custom_call.1} parent=1 // pred_check
      _
    $region7: #{tpu_custom_call.1} parent=1 // pred_check_branch
      %23 = sbr.rel (0) target = $region9
    $region8: #{tpu_custom_call.1} parent=1 // pred_region
      %s24 = sadd.s32 0, 0
      %p25 = scmp.lt.s32.totalorder %s24, 0
      %s26 = scalar_select %p25, %s24, 0
      %s27 = smul.u32 2, %s26
      %p28 = scmp.lt.s32.totalorder %s27, 1
      %s29 = scalar_select %p28, %s27, 1
      %s30 = smul.addr %s29, 8
      %s31 = scalar_lea.vmem %s1, %s30
      %s32 = sadd.s32 0, 0
      %p33 = scmp.lt.s32.totalorder %s32, 0
      %s34 = scalar_select %p33, %s32, 0
      %s35 = smul.u32 2, %s34
    $region9: #{tpu_custom_call.1} parent=1 // pred_fallthru
      _
    %s36 = sadd.s32 0, 0
    %p37 = scmp.lt.s32.totalorder %s36, 0
    %s38 = scalar_select %p37, %s36, 0
    %s39 = smul.u32 2, %s38
    %p40 = scmp.lt.s32.totalorder %s39, 1
    %s41 = scalar_select %p40, %s39, 1
    %s42 = smul.addr %s41, 8
    %s43 = scalar_lea.vmem %s0, %s42
    %s44 = sadd.s32 0, 0
    %p45 = scmp.lt.s32.totalorder %s44, 0
    %s46 = scalar_select %p45, %s44, 0
    %s47 = smul.u32 2, %s46
    %p48 = scmp.lt.s32.totalorder %s47, 1
    %s49 = scalar_select %p48, %s47, 1
    %s50 = smul.addr %s49, 8
    %s51 = scalar_lea.vmem %s1, %s50
    %s52 = sadd.s32 0, 0
    %p53 = scmp.lt.s32.totalorder %s52, 0
    %s54 = scalar_select %p53, %s52, 0
    %s55 = smul.u32 2, %s54
    %p56 = scmp.lt.s32.totalorder %s55, 1
    %s57 = scalar_select %p56, %s55, 1
    %s58 = smul.addr %s57, 8
    %s59 = scalar_lea.vmem %s0, %s58
    %s60 = sadd.s32 0, 0
    %p61 = scmp.lt.s32.totalorder %s60, 0
    %s62 = scalar_select %p61, %s60, 0
    %s63 = smul.u32 2, %s62
    %s64 = sadd.s32 0, 0
    %p65 = scmp.lt.s32.totalorder %s64, 0
    %s66 = scalar_select %p65, %s64, 0
    %s67 = smul.u32 2, %s66
    %p68 = scmp.lt.s32.totalorder %s67, 1
    %s69 = scalar_select %p68, %s67, 1
    %s70 = smul.addr %s69, 8
    %s71 = scalar_lea.vmem %s1, %s70
    %s72 = sadd.s32 0, 0
    %p73 = scmp.lt.s32.totalorder %s72, 0
    %s74 = scalar_select %p73, %s72, 0
    %s75 = smul.u32 2, %s74
    %p76 = scmp.eq.s32.totalorder 0, 0
    // Predicated region
    $region10: #{tpu_custom_call.1} parent=1 // pred_check
      %p77 = pneg %p76
    $region11: #{tpu_custom_call.1} parent=1 // pred_check_branch
      %79 = sbr.rel (%p77) target = $region13
    $region12: #{tpu_custom_call.1} parent=1 // pred_region
      %vm80 = vcmask 7168
      %81 = vst.msk [vmem:[#allocation2] sm:$0xff] %vm80, 0.0
      %82 = vst.msk [vmem:[#allocation2 + $0x8] sm:$0xff] %vm80, 0.0
    $region13: #{tpu_custom_call.1} parent=1 // pred_fallthru
      _
    %v83 = vld [vmem:[%s59] sm:$0xff]
    %v84 = vld [vmem:[%s59 + $0x8] sm:$0xff]
    %v85 = vld [vmem:[%s71] sm:$0xff]
    %v86 = vld [vmem:[%s71 + $0x8] sm:$0xff]
    %v87 = vlaneseq
    %v88 = vand.u32 %v87, 127
    %89 = vset.pattern.permute.xlu0 0
    %90 = vperm.xlu0 %89, %v85
    %v91 = vpop.permute.xlu0 %90
    %92 = vset.pattern.permute.xlu0 0
    %93 = vperm.xlu0 %92, %v86
    %v94 = vpop.permute.xlu0 %93
    %vm95 = vcmp.eq.s32.totalorder %v88, %v91
    %vm96 = vcmp.eq.s32.totalorder %v88, %v94
    %vm97 = vcmask 261120
    %v98 = vsel %vm97, %v83, -inf
    %99 = vmax.xlane.f32.xlu0 %v98
    %v100 = vpop.xlane.xlu0 %99
    %v101 = vsel %vm97, %v84, -inf
    %102 = vmax.xlane.f32.xlu0 %v101
    %v103 = vpop.xlane.xlu0 %102
    %v104 = vsub.f32 %v83, %v100
    %v105 = vsub.f32 %v84, %v103
    %v106 = vmul.f32 %v104, 1.442695
    %v107 = vpow.pop %v106
    %v108 = vmul.f32 %v105, 1.442695
    %v109 = vpow.pop %v108
    %v110 = vsel %vm97, %v107, 0.0
    %111 = vadd.xlane.f32.xlu0 %v110
    %v112 = vpop.xlane.xlu0 %111
    %v113 = vsel %vm97, %v109, 0.0
    %114 = vadd.xlane.f32.xlu0 %v113
    %v115 = vpop.xlane.xlu0 %114
    %v116 = vlog2.pop %v112
    %v117 = vmul.f32 %v116, 0.6931472
    %v118 = vlog2.pop %v115
    %v119 = vmul.f32 %v118, 0.6931472
    %v120 = vadd.f32 %v100, %v117
    %v121 = vadd.f32 %v103, %v119
    %v122 = vsel %vm97, %v83, 0.0
    %123 = vadd.xlane.f32.xlu0 %v122
    %v124 = vpop.xlane.xlu0 %123
    %v125 = vsel %vm97, %v84, 0.0
    %126 = vadd.xlane.f32.xlu0 %v125
    %v127 = vpop.xlane.xlu0 %126
    %v128 = vsel %vm95, %v83, 0.0
    %v129 = vsel %vm96, %v84, 0.0
    %v130 = vsel %vm97, %v128, 0.0
    %131 = vadd.xlane.f32.xlu0 %v130
    %v132 = vpop.xlane.xlu0 %131
    %v133 = vsel %vm97, %v129, 0.0
    %134 = vadd.xlane.f32.xlu0 %v133
    %v135 = vpop.xlane.xlu0 %134
    %v136 = vmul.f32 %v120, 32.0
    %v137 = vmul.f32 %v121, 32.0
    %v138 = vsub.f32 %v124, %v136
    %v139 = vsub.f32 %v127, %v137
    %v140 = vmul.f32 %v138, 0.0032258064
    %v141 = vmul.f32 %v139, 0.0032258064
    %v142 = vsub.f32 %v132, %v120
    %v143 = vsub.f32 %v135, %v121
    %v144 = vmul.f32 %v142, 0.8967742
    %v145 = vmul.f32 %v143, 0.8967742
    %v146 = vadd.f32 %v140, %v144
    %v147 = vadd.f32 %v141, %v145
    %s148 = sadd.s32 0, 0
    %s149 = smul.u32 %s148, 16
    %v150 = vlaneseq
    %v151 = vshrl.u32 %v150, 7
    %v152 = vadd.s32 %v151, 8
    %v153 = vstv %s149
    %v154 = vadd.s32 %v153, %v151
    %v155 = vadd.s32 %v153, %v152
    %vm156 = vcmp.lt.s32.totalorder %v154, 16
    %vm157 = vcmp.lt.s32.totalorder %v155, 16
    %v158 = vsel %vm156, %v146, 0.0
    %v159 = vsel %vm157, %v147, 0.0
    %v160 = vld [vmem:[#allocation2] sm:$0xff]
    %v161 = vld [vmem:[#allocation2 + $0x8] sm:$0xff]
    %v162 = vadd.f32 %v160, %v158
    %v163 = vadd.f32 %v161, %v159
    %vm164 = vcmask 7168
    %165 = vst.msk [vmem:[#allocation2] sm:$0xff] %vm164, %v162
    %166 = vst.msk [vmem:[#allocation2 + $0x8] sm:$0xff] %vm164, %v163
    // Predicated region
    $region14: #{tpu_custom_call.1} parent=1 // pred_check
      %p167 = pneg %p76
    $region15: #{tpu_custom_call.1} parent=1 // pred_check_branch
      %169 = sbr.rel (%p167) target = $region17
    $region16: #{tpu_custom_call.1} parent=1 // pred_region
      %v170 = vld [vmem:[#allocation2] sm:$0xff]
      %v171 = vld [vmem:[#allocation2 + $0x8] sm:$0xff]
      %v172 = vsel %vm164, %v170, 0.0
      %v173 = vsel %vm164, %v171, 0.0
      %v174 = vadd.f32 %v172, %v173
      %175 = vadd.xlane.f32.xlu0 %v174
      %v176 = vpop.xlane.xlu0 %175
      %v177 = vrot.slane %v176, 4
      %v178 = vadd.f32 %v176, %v177
      %v179 = vrot.slane %v178, 2
      %v180 = vadd.f32 %v178, %v179
      %v181 = vrot.slane %v180, 1
      %v182 = vadd.f32 %v180, %v181
      %s183 = vtos %v182
      %v184 = vstv %s183
      %vm185 = vcmask 0
      %186 = vst.msk [vmem:[#allocation3] sm:$0x1] %vm185, %v184
    $region17: #{tpu_custom_call.1} parent=1 // pred_fallthru
      _
    // Predicated region
    $region18: #{tpu_custom_call.1} parent=1 // pred_check
      _
    $region19: #{tpu_custom_call.1} parent=1 // pred_check_branch
      %188 = sbr.rel (0) target = $region21
    $region20: #{tpu_custom_call.1} parent=1 // pred_region
      %s190 = ssub.s32 16, 16
      %191 = vsyncadd [#allocation4], %s190
      %s193 = sshll.u32 [#allocation3], 4
      %s194 = int_to_ptr.vmem [resolvable:$true] %s193
      %196 = dma.vmem_to_hbm [thread:$0]  %s194, 16, %s2, [#allocation4]
    $region21: #{tpu_custom_call.1} parent=1 // pred_fallthru
      _
    // Predicated region
    $region22: #{tpu_custom_call.1} parent=1 // pred_check
      _
    $region23: #{tpu_custom_call.1} parent=1 // pred_check_branch
      %198 = sbr.rel (0) target = $region25
    $region24: #{tpu_custom_call.1} parent=1 // pred_region
      %199 = dma.done [#allocation4], 16
    $region25: #{tpu_custom_call.1} parent=1 // pred_fallthru
      _
    %200 = vsyncpa [#allocation4], 1

</llo_original>
